<compile_context>
chip_gen: v7x
topology: tpu7x:2x2x1
jax: 0.10.0
libtpu: 0.0.40
codegen_flags: <defaults>
</compile_context>

<pallas_src>
import functools

import jax
import jax.numpy as jnp
from jax import lax
from jax.experimental import pallas as pl
from jax.experimental.pallas import tpu as pltpu


def _round_up(x, m):
    return ((x + m - 1) // m) * m


def _vmem_limit_bytes():
    """Scoped-VMEM limit with headroom; v7x has only 64 MiB/TC vs 128 MiB on v5e/v6e."""
    cap = 64 * 1024 * 1024
    try:
        info = pltpu.get_tpu_info()
        cap = int(getattr(info, "vmem_capacity_bytes", cap))
    except Exception:
        pass
    return int(max(32 * 1024 * 1024, min(cap - 16 * 1024 * 1024, 100 * 1024 * 1024)))


def dynaam_prepare_weights(weights, *, num_sub_centers, compute_dtype=jnp.bfloat16,
                           class_pad_to=512):
    """(C*S, D) raw weights -> (S, D, Cp) row-normalized, kernel layout, cast.

    This is a full HBM pass over the weights: call it ONCE and cache the result
    (e.g. keep it in the train state), not on every forward step.
    """
    CS, D = weights.shape
    S = num_sub_centers
    C = CS // S
    w = weights.astype(jnp.float32)
    # Fold 1/||row|| into the weights (eps 1e-24 on sum-of-squares == 1e-12 on
    # the norm, matching F.normalize).
    inv_wn = lax.rsqrt(jnp.maximum(jnp.sum(w * w, axis=1, keepdims=True), 1e-24))
    w = w * inv_wn
    # torch row index = class*S + sub  ->  (C, S, D) -> (S, D, C): lane-dense C.
    w = w.reshape(C, S, D).transpose(1, 2, 0)
    Cp = _round_up(C, class_pad_to)
    if Cp != C:
        w = jnp.pad(w, ((0, 0), (0, 0), (0, Cp - C)))
    return w.astype(compute_dtype)


def dynaam_kernel(hit_ref, x_ref, w_ref, margins_ref, label_ref, out_ref, *,
                  scale, num_sub_centers, c_tile, c_chunk):
    S = num_sub_centers
    bt = x_ref.shape[0]
    j = pl.program_id(0)            # class tile (outer, "parallel")
    i = pl.program_id(1)            # batch tile (inner, "arbitrary")
    n_bt = pl.num_programs(1)

    x_c = x_ref[...]                # (bt, D), pre-normalized, compute dtype
    label = label_ref[...]          # (bt, 1) int32

    def matmul(s, c0):
        # MXU matmul, f32 accumulation; weights already L2-normalized.
        w = w_ref[s, :, pl.ds(c0, c_chunk)]                     # (D, c_chunk)
        return jnp.dot(x_c, w, preferred_element_type=jnp.float32)

    def chunk_body(c0, with_margin):
        if with_margin:
            col = (j * c_tile + c0) + lax.broadcasted_iota(
                jnp.int32, (bt, c_chunk), 1)
            onehot = col == label                               # (bt, c_chunk)

            def mrs(v):  # masked row-sum == "fancy index" at the label column
                return jnp.sum(jnp.where(onehot, v, 0.0), axis=1, keepdims=True)

            cos0 = matmul(0, c0)
            max_cos = cos0
            main = mrs(cos0)
            shift = jnp.zeros_like(main)
            for s in range(1, S):
                cs = matmul(s, c0)
                max_cos = jnp.maximum(max_cos, cs)
                shift = shift + jnp.abs(main - mrs(cs))
            if S > 1:
                avg_shift = shift * (1.0 / float(S - 1))
            else:
                avg_shift = jnp.zeros_like(shift)               # guard 0-div
            target = mrs(max_cos)
            batch_margin = mrs(margins_ref[:, pl.ds(c0, c_chunk)])
            new_target = target - batch_margin * (1.0 + avg_shift)
            res = jnp.where(onehot, new_target, max_cos)
        else:
            max_cos = matmul(0, c0)
            for s in range(1, S):
                max_cos = jnp.maximum(max_cos, matmul(s, c0))
            res = max_cos
        out_ref[:, pl.ds(c0, c_chunk)] = (scale * res).astype(out_ref.dtype)

    # Skip the masked-sum / margin math on tiles that contain no label column.
    hit = hit_ref[j * n_bt + i] != 0

    @pl.when(hit)
    def _():
        for c0 in range(0, c_tile, c_chunk):
            chunk_body(c0, True)

    @pl.when(jnp.logical_not(hit))
    def _():
        for c0 in range(0, c_tile, c_chunk):
            chunk_body(c0, False)


def dynaam_forward(x, w_prepared, margins, label, *, num_classes, scale,
                   b_tile=256, c_tile=512, c_chunk=256):
    """x: (B, D); w_prepared: (S, D, Cp) from dynaam_prepare_weights;
    margins: (C,); label: (B,) int -> (B, C) scaled logits."""
    B, D = x.shape
    S, Dw, Cw = w_prepared.shape
    assert Dw == D, "weight / input feature mismatch"
    C = num_classes
    compute_dtype = w_prepared.dtype

    # --- tile sizing: lane/sublane aligned; pad instead of full-extent fallback.
    ct = _round_up(min(c_tile, _round_up(C, 128)), 128)
    bt = _round_up(min(b_tile, _round_up(B, 8)), 8)
    cchunk = _round_up(min(c_chunk, ct), 128)
    if ct % cchunk != 0:
        cchunk = 128

    Cg = _round_up(max(Cw, C), ct)
    Bp = _round_up(B, bt)
    if Cg != Cw:
        # Prepared weights padded for a different c_tile; re-pad (avoid by
        # matching class_pad_to to c_tile when preparing).
        w_prepared = jnp.pad(w_prepared, ((0, 0), (0, 0), (0, Cg - Cw)))

    # --- normalize x ONCE in f32, cast to the MXU dtype, pad batch rows.
    xf = x.astype(jnp.float32)
    inv_xn = lax.rsqrt(jnp.maximum(jnp.sum(xf * xf, axis=1, keepdims=True), 1e-24))
    xn = (xf * inv_xn).astype(compute_dtype)
    if Bp != B:
        xn = jnp.pad(xn, ((0, Bp - B), (0, 0)))

    labels = label.astype(jnp.int32).reshape(B, 1)
    if Bp != B:
        labels = jnp.pad(labels, ((0, Bp - B), (0, 0)), constant_values=-1)

    margins2 = margins.astype(jnp.float32).reshape(1, C)
    if Cg != C:
        margins2 = jnp.pad(margins2, ((0, 0), (0, Cg - C)))

    n_ct = Cg // ct
    n_bt = Bp // bt

    # --- per-(class-tile, batch-tile) hit bitmap (scalar prefetch, SMEM).
    lab_t = labels.reshape(n_bt, bt)
    lab_tile_idx = jnp.where(lab_t >= 0, lab_t // ct, -1)
    hit_map = jnp.any(
        lab_tile_idx[None, :, :] == jnp.arange(n_ct, dtype=jnp.int32)[:, None, None],
        axis=2).astype(jnp.int32).reshape(-1)                    # (n_ct * n_bt,)

    kernel = functools.partial(
        dynaam_kernel, scale=float(scale), num_sub_centers=S,
        c_tile=ct, c_chunk=cchunk)

    w_itemsize = jnp.dtype(compute_dtype).itemsize
    cost = pl.CostEstimate(
        flops=2 * Bp * Cg * D * S,
        transcendentals=0,
        bytes_accessed=(S * Cg * D * w_itemsize            # weights: read exactly once
                        + n_ct * Bp * D * w_itemsize       # x re-read per class tile
                        + Bp * Cg * 4                      # logits out
                        + Cg * 4 + Bp * 4))                # margins, labels

    out = pl.pallas_call(
        kernel,
        out_shape=jax.ShapeDtypeStruct((Bp, Cg), jnp.float32),
        grid_spec=pltpu.PrefetchScalarGridSpec(
            num_scalar_prefetch=1,
            # Class axis OUTER, batch axis INNER: the weight block index only
            # depends on j, so it stays resident (no re-DMA) across the inner
            # batch sweep; the v7x dual-TC split lands on the class axis.
            grid=(n_ct, n_bt),
            in_specs=[
                pl.BlockSpec((bt, D), lambda j, i, hit: (i, 0)),        # x
                pl.BlockSpec((S, D, ct), lambda j, i, hit: (0, 0, j)),  # w (streamed once)
                pl.BlockSpec((1, ct), lambda j, i, hit: (0, j)),        # margins
                pl.BlockSpec((bt, 1), lambda j, i, hit: (i, 0)),        # labels
            ],
            out_specs=pl.BlockSpec((bt, ct), lambda j, i, hit: (i, j)),
        ),
        compiler_params=pltpu.CompilerParams(
            dimension_semantics=("parallel", "arbitrary"),
            vmem_limit_bytes=_vmem_limit_bytes(),
        ),
        cost_estimate=cost,
    )(hit_map, xn, w_prepared, margins2, labels)

    return out[:B, :C]


def dynaam_reference(x, weights, margins, label, *, num_sub_centers, scale):
    """Pure-JAX reference mirroring the PyTorch forward, for verification."""
    B, D = x.shape
    S = num_sub_centers
    C = weights.shape[0] // S
    xn = x / jnp.maximum(jnp.linalg.norm(x, axis=1, keepdims=True), 1e-12)
    wn = weights / jnp.maximum(jnp.linalg.norm(weights, axis=1, keepdims=True), 1e-12)
    cos = (xn @ wn.T).reshape(B, C, S)
    max_cos = jnp.max(cos, axis=2)
    batch_margins = margins[label]
    target = max_cos[jnp.arange(B), label]
    main = cos[jnp.arange(B), label, 0]
    subs = cos[jnp.arange(B), label, 1:]
    avg_shift = jnp.sum(jnp.abs(main[:, None] - subs), axis=1) / (S - 1)
    weighted_margin = batch_margins * (1.0 + avg_shift)
    new_target = target - weighted_margin
    max_cos = max_cos.at[jnp.arange(B), label].set(new_target)
    return scale * max_cos


if __name__ == "__main__":
    # Small deterministic shapes that exercise multi-tile grids and padding.
    B = 16           # batch
    D = 64           # in_features
    C = 256          # out_features (num classes)
    S = 3            # num_sub_centers
    SCALE = 64.0
    BASE_MARGIN = 0.3

    key = jax.random.PRNGKey(0)
    kx, kw, kl, kw3, kl3 = jax.random.split(key, 5)

    x = jax.random.normal(kx, (B, D), dtype=jnp.float32)
    bound = (6.0 / (D + C * S)) ** 0.5   # Xavier-uniform-style deterministic init
    weights = jax.random.uniform(kw, (C * S, D), minval=-bound, maxval=bound,
                                 dtype=jnp.float32)
    margins = jnp.ones((C,), dtype=jnp.float32) * BASE_MARGIN
    label = jax.random.randint(kl, (B,), 0, C, dtype=jnp.int32)

    ref = dynaam_reference(x, weights, margins, label,
                           num_sub_centers=S, scale=SCALE)

    # 1) f32 compute path, exactly divisible 2x2 grid: tight numerical check.
    w_f32 = dynaam_prepare_weights(weights, num_sub_centers=S,
                                   compute_dtype=jnp.float32, class_pad_to=128)
    out_f32 = jax.block_until_ready(
        dynaam_forward(x, w_f32, margins, label, num_classes=C, scale=SCALE,
                       b_tile=8, c_tile=128, c_chunk=128))
    assert out_f32.shape == (B, C)
    assert jnp.allclose(out_f32, ref, atol=1e-3, rtol=1e-3), (
        f"f32 max abs diff {float(jnp.max(jnp.abs(out_f32 - ref)))}")

    # 2) bf16 MXU / f32-accumulation production path, 256-wide class tile.
    w_bf16 = dynaam_prepare_weights(weights, num_sub_centers=S,
                                    compute_dtype=jnp.bfloat16, class_pad_to=256)
    out_bf16 = jax.block_until_ready(
        dynaam_forward(x, w_bf16, margins, label, num_classes=C, scale=SCALE,
                       b_tile=128, c_tile=256, c_chunk=256))
    assert jnp.allclose(out_bf16, ref, atol=0.5, rtol=0.05), (
        f"bf16 max abs diff {float(jnp.max(jnp.abs(out_bf16 - ref)))}")

    # 3) Non-divisible batch (10) and class count (200): exercises the padding
    #    path (no full-extent fallback blocks).
    B3, C3 = 10, 200
    x3 = x[:B3]
    weights3 = jax.random.uniform(kw3, (C3 * S, D), minval=-bound, maxval=bound,
                                  dtype=jnp.float32)
    margins3 = jnp.ones((C3,), dtype=jnp.float32) * BASE_MARGIN
    label3 = jax.random.randint(kl3, (B3,), 0, C3, dtype=jnp.int32)
    ref3 = dynaam_reference(x3, weights3, margins3, label3,
                            num_sub_centers=S, scale=SCALE)
    w3 = dynaam_prepare_weights(weights3, num_sub_centers=S,
                                compute_dtype=jnp.float32, class_pad_to=128)
    out3 = jax.block_until_ready(
        dynaam_forward(x3, w3, margins3, label3, num_classes=C3, scale=SCALE,
                       b_tile=8, c_tile=128, c_chunk=128))
    assert out3.shape == (B3, C3)
    assert jnp.allclose(out3, ref3, atol=1e-3, rtol=1e-3), (
        f"padded-case max abs diff {float(jnp.max(jnp.abs(out3 - ref3)))}")

    print("KERNEL_OK")
</pallas_src>

<mosaic_0001>
module attributes {stable_mosaic.version = 11 : i64} {
  func.func @dynaam_kernel(%arg0: i32, %arg1: i32, %arg2: memref<4xi32, #tpu.memory_space<smem>>, %arg3: memref<8x64xf32, #tpu.memory_space<vmem>>, %arg4: memref<3x64x128xf32, #tpu.memory_space<vmem>>, %arg5: memref<1x128xf32, #tpu.memory_space<vmem>>, %arg6: memref<8x1xi32, #tpu.memory_space<vmem>>, %arg7: memref<8x128xf32, #tpu.memory_space<vmem>>) attributes {dimension_semantics = [#tpu.dimension_semantics<parallel>, #tpu.dimension_semantics<arbitrary>], iteration_bounds = array<i64: 2, 2>, scalar_prefetch = 1 : i64, scratch_operands = 0 : i64, tpu.core_type = #tpu.core_type<tc>, window_params = [{transform_indices = @transform_0, window_bounds = array<i64: 8, 64>}, {transform_indices = @transform_1, window_bounds = array<i64: 3, 64, 128>}, {transform_indices = @transform_2, window_bounds = array<i64: 1, 128>}, {transform_indices = @transform_3, window_bounds = array<i64: 8, 1>}, {transform_indices = @transform_4, window_bounds = array<i64: 8, 128>}]} {
    %c0 = arith.constant 0 : index
    %c0_0 = arith.constant 0 : index
    %0 = vector.load %arg3[%c0, %c0_0] : memref<8x64xf32, #tpu.memory_space<vmem>>, vector<8x64xf32>
    %c0_1 = arith.constant 0 : index
    %c0_2 = arith.constant 0 : index
    %1 = vector.load %arg6[%c0_1, %c0_2] : memref<8x1xi32, #tpu.memory_space<vmem>>, vector<8x1xi32>
    %c2_i32 = arith.constant 2 : i32
    %2 = arith.muli %arg0, %c2_i32 : i32
    %3 = arith.addi %2, %arg1 : i32
    %4 = arith.index_cast %3 : i32 to index
    %5 = memref.load %arg2[%4] : memref<4xi32, #tpu.memory_space<smem>>
    %c0_i32 = arith.constant 0 : i32
    %6 = arith.cmpi ne, %5, %c0_i32 : i32
    %7 = arith.extui %6 : i1 to i32
    %c0_i32_3 = arith.constant 0 : i32
    %8 = arith.cmpi ne, %7, %c0_i32_3 : i32
    scf.if %8 {
      %c128_i32 = arith.constant 128 : i32
      %12 = arith.muli %arg0, %c128_i32 : i32
      %c0_i32_5 = arith.constant 0 : i32
      %13 = arith.addi %12, %c0_i32_5 : i32
      %14 = tpu.iota {dimensions = array<i32: 1>} : vector<8x128xi32>
      %15 = vector.broadcast %13 : i32 to vector<8x128xi32>
      %16 = arith.addi %15, %14 : vector<8x128xi32>
      %17 = vector.broadcast %1 : vector<8x1xi32> to vector<8x128xi32>
      %18 = arith.cmpi eq, %16, %17 : vector<8x128xi32>
      %c0_6 = arith.constant 0 : index
      %c0_7 = arith.constant 0 : index
      %c0_8 = arith.constant 0 : index
      %19 = vector.load %arg4[%c0_6, %c0_7, %c0_8] : memref<3x64x128xf32, #tpu.memory_space<vmem>>, vector<1x64x128xf32>
      %20 = vector.shape_cast %19 : vector<1x64x128xf32> to vector<64x128xf32>
      %cst = arith.constant dense<0.000000e+00> : vector<8x128xf32>
      %21 = tpu.matmul %0, %20, %cst {dimension_numbers = #tpu.dot_dimension_numbers<[1], [0], [0], [1], [0, 0, 1, 1], [], []>} : vector<8x64xf32>, vector<64x128xf32>, vector<8x128xf32> -> vector<8x128xf32>
      %cst_9 = arith.constant 0.000000e+00 : f32
      %22 = vector.broadcast %cst_9 : f32 to vector<8x128xf32>
      %23 = arith.select %18, %21, %22 : vector<8x128xi1>, vector<8x128xf32>
      %cst_10 = arith.constant dense<0.000000e+00> : vector<8xf32>
      %24 = vector.multi_reduction <add>, %23, %cst_10 [1] : vector<8x128xf32> to vector<8xf32>
      %25 = vector.shape_cast %24 : vector<8xf32> to vector<8x1xf32>
      %cst_11 = arith.constant 0.000000e+00 : f32
      %26 = vector.broadcast %cst_11 : f32 to vector<8x1xf32>
      %c1 = arith.constant 1 : index
      %c0_12 = arith.constant 0 : index
      %c0_13 = arith.constant 0 : index
      %27 = vector.load %arg4[%c1, %c0_12, %c0_13] : memref<3x64x128xf32, #tpu.memory_space<vmem>>, vector<1x64x128xf32>
      %28 = vector.shape_cast %27 : vector<1x64x128xf32> to vector<64x128xf32>
      %cst_14 = arith.constant dense<0.000000e+00> : vector<8x128xf32>
      %29 = tpu.matmul %0, %28, %cst_14 {dimension_numbers = #tpu.dot_dimension_numbers<[1], [0], [0], [1], [0, 0, 1, 1], [], []>} : vector<8x64xf32>, vector<64x128xf32>, vector<8x128xf32> -> vector<8x128xf32>
      %30 = arith.maximumf %21, %29 : vector<8x128xf32>
      %cst_15 = arith.constant 0.000000e+00 : f32
      %31 = vector.broadcast %cst_15 : f32 to vector<8x128xf32>
      %32 = arith.select %18, %29, %31 : vector<8x128xi1>, vector<8x128xf32>
      %cst_16 = arith.constant dense<0.000000e+00> : vector<8xf32>
      %33 = vector.multi_reduction <add>, %32, %cst_16 [1] : vector<8x128xf32> to vector<8xf32>
      %34 = vector.shape_cast %33 : vector<8xf32> to vector<8x1xf32>
      %35 = arith.subf %25, %34 : vector<8x1xf32>
      %36 = math.absf %35 : vector<8x1xf32>
      %37 = arith.addf %26, %36 : vector<8x1xf32>
      %c2 = arith.constant 2 : index
      %c0_17 = arith.constant 0 : index
      %c0_18 = arith.constant 0 : index
      %38 = vector.load %arg4[%c2, %c0_17, %c0_18] : memref<3x64x128xf32, #tpu.memory_space<vmem>>, vector<1x64x128xf32>
      %39 = vector.shape_cast %38 : vector<1x64x128xf32> to vector<64x128xf32>
      %cst_19 = arith.constant dense<0.000000e+00> : vector<8x128xf32>
      %40 = tpu.matmul %0, %39, %cst_19 {dimension_numbers = #tpu.dot_dimension_numbers<[1], [0], [0], [1], [0, 0, 1, 1], [], []>} : vector<8x64xf32>, vector<64x128xf32>, vector<8x128xf32> -> vector<8x128xf32>
      %41 = arith.maximumf %30, %40 : vector<8x128xf32>
      %cst_20 = arith.constant 0.000000e+00 : f32
      %42 = vector.broadcast %cst_20 : f32 to vector<8x128xf32>
      %43 = arith.select %18, %40, %42 : vector<8x128xi1>, vector<8x128xf32>
      %cst_21 = arith.constant dense<0.000000e+00> : vector<8xf32>
      %44 = vector.multi_reduction <add>, %43, %cst_21 [1] : vector<8x128xf32> to vector<8xf32>
      %45 = vector.shape_cast %44 : vector<8xf32> to vector<8x1xf32>
      %46 = arith.subf %25, %45 : vector<8x1xf32>
      %47 = math.absf %46 : vector<8x1xf32>
      %48 = arith.addf %37, %47 : vector<8x1xf32>
      %cst_22 = arith.constant 5.000000e-01 : f32
      %49 = vector.broadcast %cst_22 : f32 to vector<8x1xf32>
      %50 = arith.mulf %48, %49 : vector<8x1xf32>
      %cst_23 = arith.constant 0.000000e+00 : f32
      %51 = vector.broadcast %cst_23 : f32 to vector<8x128xf32>
      %52 = arith.select %18, %41, %51 : vector<8x128xi1>, vector<8x128xf32>
      %cst_24 = arith.constant dense<0.000000e+00> : vector<8xf32>
      %53 = vector.multi_reduction <add>, %52, %cst_24 [1] : vector<8x128xf32> to vector<8xf32>
      %54 = vector.shape_cast %53 : vector<8xf32> to vector<8x1xf32>
      %c0_25 = arith.constant 0 : index
      %c0_26 = arith.constant 0 : index
      %55 = vector.load %arg5[%c0_25, %c0_26] : memref<1x128xf32, #tpu.memory_space<vmem>>, vector<1x128xf32>
      %cst_27 = arith.constant 0.000000e+00 : f32
      %56 = vector.shape_cast %55 : vector<1x128xf32> to vector<1x128xf32>
      %57 = vector.broadcast %56 : vector<1x128xf32> to vector<8x128xf32>
      %58 = vector.broadcast %cst_27 : f32 to vector<8x128xf32>
      %59 = arith.select %18, %57, %58 : vector<8x128xi1>, vector<8x128xf32>
      %cst_28 = arith.constant dense<0.000000e+00> : vector<8xf32>
      %60 = vector.multi_reduction <add>, %59, %cst_28 [1] : vector<8x128xf32> to vector<8xf32>
      %61 = vector.shape_cast %60 : vector<8xf32> to vector<8x1xf32>
      %cst_29 = arith.constant 1.000000e+00 : f32
      %62 = vector.broadcast %cst_29 : f32 to vector<8x1xf32>
      %63 = arith.addf %62, %50 : vector<8x1xf32>
      %64 = arith.mulf %61, %63 : vector<8x1xf32>
      %65 = arith.subf %54, %64 : vector<8x1xf32>
      %66 = vector.shape_cast %65 : vector<8x1xf32> to vector<8x1xf32>
      %67 = vector.broadcast %66 : vector<8x1xf32> to vector<8x128xf32>
      %68 = arith.select %18, %67, %41 : vector<8x128xi1>, vector<8x128xf32>
      %cst_30 = arith.constant 6.400000e+01 : f32
      %69 = vector.broadcast %cst_30 : f32 to vector<8x128xf32>
      %70 = arith.mulf %69, %68 : vector<8x128xf32>
      %c0_31 = arith.constant 0 : index
      %c0_32 = arith.constant 0 : index
      %71 = vector.load %arg7[%c0_31, %c0_32] : memref<8x128xf32, #tpu.memory_space<vmem>>, vector<8x128xf32>
      tpu.vector_store %arg7[%c0_31, %c0_32], %70 {strides = array<i32>} : memref<8x128xf32, #tpu.memory_space<vmem>>, vector<8x128xf32>,
    } else {
    }
    %true = arith.constant true
    %9 = arith.xori %6, %true : i1
    %10 = arith.extui %9 : i1 to i32
    %c0_i32_4 = arith.constant 0 : i32
    %11 = arith.cmpi ne, %10, %c0_i32_4 : i32
    scf.if %11 {
      %c0_5 = arith.constant 0 : index
      %c0_6 = arith.constant 0 : index
      %c0_7 = arith.constant 0 : index
      %12 = vector.load %arg4[%c0_5, %c0_6, %c0_7] : memref<3x64x128xf32, #tpu.memory_space<vmem>>, vector<1x64x128xf32>
      %13 = vector.shape_cast %12 : vector<1x64x128xf32> to vector<64x128xf32>
      %cst = arith.constant dense<0.000000e+00> : vector<8x128xf32>
      %14 = tpu.matmul %0, %13, %cst {dimension_numbers = #tpu.dot_dimension_numbers<[1], [0], [0], [1], [0, 0, 1, 1], [], []>} : vector<8x64xf32>, vector<64x128xf32>, vector<8x128xf32> -> vector<8x128xf32>
      %c1 = arith.constant 1 : index
      %c0_8 = arith.constant 0 : index
      %c0_9 = arith.constant 0 : index
      %15 = vector.load %arg4[%c1, %c0_8, %c0_9] : memref<3x64x128xf32, #tpu.memory_space<vmem>>, vector<1x64x128xf32>
      %16 = vector.shape_cast %15 : vector<1x64x128xf32> to vector<64x128xf32>
      %cst_10 = arith.constant dense<0.000000e+00> : vector<8x128xf32>
      %17 = tpu.matmul %0, %16, %cst_10 {dimension_numbers = #tpu.dot_dimension_numbers<[1], [0], [0], [1], [0, 0, 1, 1], [], []>} : vector<8x64xf32>, vector<64x128xf32>, vector<8x128xf32> -> vector<8x128xf32>
      %18 = arith.maximumf %14, %17 : vector<8x128xf32>
      %c2 = arith.constant 2 : index
      %c0_11 = arith.constant 0 : index
      %c0_12 = arith.constant 0 : index
      %19 = vector.load %arg4[%c2, %c0_11, %c0_12] : memref<3x64x128xf32, #tpu.memory_space<vmem>>, vector<1x64x128xf32>
      %20 = vector.shape_cast %19 : vector<1x64x128xf32> to vector<64x128xf32>
      %cst_13 = arith.constant dense<0.000000e+00> : vector<8x128xf32>
      %21 = tpu.matmul %0, %20, %cst_13 {dimension_numbers = #tpu.dot_dimension_numbers<[1], [0], [0], [1], [0, 0, 1, 1], [], []>} : vector<8x64xf32>, vector<64x128xf32>, vector<8x128xf32> -> vector<8x128xf32>
      %22 = arith.maximumf %18, %21 : vector<8x128xf32>
      %cst_14 = arith.constant 6.400000e+01 : f32
      %23 = vector.broadcast %cst_14 : f32 to vector<8x128xf32>
      %24 = arith.mulf %23, %22 : vector<8x128xf32>
      %c0_15 = arith.constant 0 : index
      %c0_16 = arith.constant 0 : index
      %25 = vector.load %arg7[%c0_15, %c0_16] : memref<8x128xf32, #tpu.memory_space<vmem>>, vector<8x128xf32>
      tpu.vector_store %arg7[%c0_15, %c0_16], %24 {strides = array<i32>} : memref<8x128xf32, #tpu.memory_space<vmem>>, vector<8x128xf32>,
    } else {
    }
    return
  }
  func.func @transform_0(%arg0: i32, %arg1: i32, %arg2: memref<4xi32, #tpu.memory_space<smem>>) -> (i32, i32) {
    %c0_i32 = arith.constant 0 : i32
    %c0_i32_0 = arith.constant 0 : i32
    return %arg1, %c0_i32 : i32, i32
  }
  func.func @transform_1(%arg0: i32, %arg1: i32, %arg2: memref<4xi32, #tpu.memory_space<smem>>) -> (i32, i32, i32) {
    %c0_i32 = arith.constant 0 : i32
    %c0_i32_0 = arith.constant 0 : i32
    %c0_i32_1 = arith.constant 0 : i32
    return %c0_i32, %c0_i32_0, %arg0 : i32, i32, i32
  }
  func.func @transform_2(%arg0: i32, %arg1: i32, %arg2: memref<4xi32, #tpu.memory_space<smem>>) -> (i32, i32) {
    %c0_i32 = arith.constant 0 : i32
    %c0_i32_0 = arith.constant 0 : i32
    return %c0_i32, %arg0 : i32, i32
  }
  func.func @transform_3(%arg0: i32, %arg1: i32, %arg2: memref<4xi32, #tpu.memory_space<smem>>) -> (i32, i32) {
    %c0_i32 = arith.constant 0 : i32
    %c0_i32_0 = arith.constant 0 : i32
    return %arg1, %c0_i32 : i32, i32
  }
  func.func @transform_4(%arg0: i32, %arg1: i32, %arg2: memref<4xi32, #tpu.memory_space<smem>>) -> (i32, i32) {
    %c0_i32 = arith.constant 0 : i32
    return %arg1, %arg0 : i32, i32
  }
}

</mosaic_0001>

<llo_original>
// kernel: tpu_custom_call.1
$region0: #{tpu_custom_call.1}
  #allocation0 [shape = 'u32[]', space=smem, size = 0x4, offset = 0x4, fixed_abs, tag = 'smem constant byte address 0x4 - core index']
  #allocation1 [shape = 'u32[144,128]{1,0:T(1,128)}', space=vmem, size = 0x12000, scoped, tag = 'internal scratch']
  #allocation2 [shape = 's32[1]{0}', space=sflag, size = 0x4, scoped, tag = 'scoped memory for tpu_custom_call.1']
  #allocation3 [shape = 'u8[512]{0}', space=smem, size = 0x200, scoped, tag = 'prefetched SMEM operand 0']
  %s0 = inlined_call_operand.vmem [shape: s32[4], index: 0, kind: input, shape index: {}]
  %s1 = inlined_call_operand.vmem [shape: f32[16,64], index: 1, kind: input, shape index: {}]
  %s2 = inlined_call_operand.hbm [shape: f32[3,64,256], index: 2, kind: input, shape index: {}]
  %s3 = inlined_call_operand.vmem [shape: f32[1,256], index: 3, kind: input, shape index: {}]
  %s4 = inlined_call_operand.vmem [shape: s32[16,1], index: 4, kind: input, shape index: {}]
  %s5 = inlined_call_operand.hbm [shape: f32[16,256], index: 5, kind: output, shape index: {}]
  %s6 = sld [smem:[#allocation0]]
  $region61: #{tpu_custom_call.1} parent=0
    _
  %s8 = ssub.s32 1, %s6
  %s9 = scalar_select 0, %s8, %s6
  %s10 = sshll.u32 %s0, 4
  %s11 = int_to_ptr.vmem [resolvable:$true] %s10
  %13 = dma.vmem_to_smem %s11, 16, [#allocation3], [#allocation2]
  %14 = dma.done [#allocation2], 16
  %15 = sfence
  $region1: #{tpu_custom_call.1} parent=0
    #allocation4 [shape = 'u8[196608]{0}', space=vmem, size = 0x30000, scoped, tag = 'input window, operand 2']
    #allocation5 [shape = 's32[2]{0}', space=sflag, size = 0x8, scoped, tag = 'scoped memory for tpu_custom_call.1']
    #allocation6 [shape = 's32[2]{0}', space=sflag, size = 0x8, scoped, tag = 'scoped memory for tpu_custom_call.1']
    #allocation7 [shape = 'u8[8192]{0}', space=vmem, size = 0x2000, scoped, tag = 'output window, operand 0']
    %16 = vsyncpa [#allocation5], 0
    %s17 = scalar_lea.sflag [#allocation5], 1
    %18 = vsyncpa %s17, 0
    %19 = vsyncpa [#allocation6], 0
    %s20 = scalar_lea.sflag [#allocation6], 1
    %21 = vsyncpa %s20, 0
    loop: start=0, step=1, limit=6
    $region2: #{tpu_custom_call.1} parent=1 // loop_pre_header
      _
    $region3: #{tpu_custom_call.1} parent=1 // loop_header
      %s23 = sphi 0, %s27
      %p24 = scmp.ge.s32.totalorder %s23, 6
      %s30 = sphi 0, %s42
      %s31 = sphi 0, %s38
      %s32 = sphi 0, %s30
      %s33 = sphi 0, %s31
      %s34 = sphi 0, %s32
      %s35 = sphi 0, %s33
      %s45 = sphi 0, %s47
      %s48 = sphi 0, %s45
      %s49 = sphi 0, %s48
      %s65 = sphi 0, %s49
      %s71 = sphi 0, %s73
      %s74 = sphi 0, %s71
      %s75 = sphi 0, %s74
      %s91 = sphi 0, %s75
      %s97 = sphi 0, %s99
      %s100 = sphi 0, %s97
      %s101 = sphi 0, %s100
      %s117 = sphi 0, %s101
      %s123 = sphi 0, %s125
      %s126 = sphi 0, %s123
      %s127 = sphi 0, %s126
      %s143 = sphi 0, %s127
      %s151 = sphi 0, %s153
      %s154 = sphi 0, %s151
      %s155 = sphi 0, %s154
      %s171 = sphi 0, %s155
    $region4: #{tpu_custom_call.1} parent=1 // loop_header_branch
      %26 = sbr.rel (%p24) target = $region8
    $region5: #{tpu_custom_call.1} parent=1 // loop_body
      %s28 = ssub.s32 %s23, 1
      %s29 = ssub.s32 %s23, 2
      %s36 = sadd.s32 1, %s31
      %p37 = scmp.ge.s32.totalorder %s36, 2
      %s38 = scalar_select %p37, 0, %s36
      %s39 = sadd.s32 1, %s30
      %s40 = scalar_select %p37, %s39, %s30
      %p41 = scmp.ge.s32.totalorder %s40, 2
      %s42 = scalar_select %p41, 0, %s40
      %s43 = ssub.s32 %s31, %s38
      %p44 = scmp.eq.s32.totalorder %s43, 0
      %s46 = sadd.s32 %s45, 1
      %s47 = scalar_select %p44, %s45, %s46
      %p50 = pneg %p44
      %p51 = scmp.eq.s32.totalorder %s23, 3
      %p52 = por %p50, %p51
      %p53 = scmp.ne.s32.totalorder %s45, %s48
      %p54 = scmp.eq.s32.totalorder %s23, 0
      %p55 = por %p53, %p54
      %p56 = scmp.ne.s32.totalorder %s45, %s48
      %p57 = scmp.eq.s32.totalorder %s28, 3
      %p58 = por %p56, %p57
      %p59 = scmp.ne.s32.totalorder %s48, %s49
      %p60 = scmp.eq.s32.totalorder %s28, 0
      %p61 = por %p59, %p60
      %p62 = scmp.ne.s32.totalorder %s48, %s49
      %p63 = scmp.eq.s32.totalorder %s29, 3
      %p64 = por %p62, %p63
      %p66 = scmp.ne.s32.totalorder %s49, %s65
      %p67 = scmp.eq.s32.totalorder %s29, 0
      %p68 = por %p66, %p67
      %s69 = ssub.s32 %s30, %s42
      %p70 = scmp.eq.s32.totalorder %s69, 0
      %s72 = sadd.s32 %s71, 1
      %s73 = scalar_select %p70, %s71, %s72
      %p76 = pneg %p70
      %p77 = scmp.eq.s32.totalorder %s23, 3
      %p78 = por %p76, %p77
      %p79 = scmp.ne.s32.totalorder %s71, %s74
      %p80 = scmp.eq.s32.totalorder %s23, 0
      %p81 = por %p79, %p80
      %p82 = scmp.ne.s32.totalorder %s71, %s74
      %p83 = scmp.eq.s32.totalorder %s28, 3
      %p84 = por %p82, %p83
      %p85 = scmp.ne.s32.totalorder %s74, %s75
      %p86 = scmp.eq.s32.totalorder %s28, 0
      %p87 = por %p85, %p86
      %p88 = scmp.ne.s32.totalorder %s74, %s75
      %p89 = scmp.eq.s32.totalorder %s29, 3
      %p90 = por %p88, %p89
      %p92 = scmp.ne.s32.totalorder %s75, %s91
      %p93 = scmp.eq.s32.totalorder %s29, 0
      %p94 = por %p92, %p93
      %s95 = ssub.s32 %s30, %s42
      %p96 = scmp.eq.s32.totalorder %s95, 0
      %s98 = sadd.s32 %s97, 1
      %s99 = scalar_select %p96, %s97, %s98
      %p102 = pneg %p96
      %p103 = scmp.eq.s32.totalorder %s23, 3
      %p104 = por %p102, %p103
      %p105 = scmp.ne.s32.totalorder %s97, %s100
      %p106 = scmp.eq.s32.totalorder %s23, 0
      %p107 = por %p105, %p106
      %p108 = scmp.ne.s32.totalorder %s97, %s100
      %p109 = scmp.eq.s32.totalorder %s28, 3
      %p110 = por %p108, %p109
      %p111 = scmp.ne.s32.totalorder %s100, %s101
      %p112 = scmp.eq.s32.totalorder %s28, 0
      %p113 = por %p111, %p112
      %p114 = scmp.ne.s32.totalorder %s100, %s101
      %p115 = scmp.eq.s32.totalorder %s29, 3
      %p116 = por %p114, %p115
      %p118 = scmp.ne.s32.totalorder %s101, %s117
      %p119 = scmp.eq.s32.totalorder %s29, 0
      %p120 = por %p118, %p119
      %s121 = ssub.s32 %s31, %s38
      %p122 = scmp.eq.s32.totalorder %s121, 0
      %s124 = sadd.s32 %s123, 1
      %s125 = scalar_select %p122, %s123, %s124
      %p128 = pneg %p122
      %p129 = scmp.eq.s32.totalorder %s23, 3
      %p130 = por %p128, %p129
      %p131 = scmp.ne.s32.totalorder %s123, %s126
      %p132 = scmp.eq.s32.totalorder %s23, 0
      %p133 = por %p131, %p132
      %p134 = scmp.ne.s32.totalorder %s123, %s126
      %p135 = scmp.eq.s32.totalorder %s28, 3
      %p136 = por %p134, %p135
      %p137 = scmp.ne.s32.totalorder %s126, %s127
      %p138 = scmp.eq.s32.totalorder %s28, 0
      %p139 = por %p137, %p138
      %p140 = scmp.ne.s32.totalorder %s126, %s127
      %p141 = scmp.eq.s32.totalorder %s29, 3
      %p142 = por %p140, %p141
      %p144 = scmp.ne.s32.totalorder %s127, %s143
      %p145 = scmp.eq.s32.totalorder %s29, 0
      %p146 = por %p144, %p145
      %s147 = ssub.s32 %s31, %s38
      %s148 = ssub.s32 %s30, %s42
      %s149 = sor.u32 %s147, %s148
      %p150 = scmp.eq.s32.totalorder %s149, 0
      %s152 = sadd.s32 %s151, 1
      %s153 = scalar_select %p150, %s151, %s152
      %p156 = pneg %p150
      %p157 = scmp.eq.s32.totalorder %s23, 3
      %p158 = por %p156, %p157
      %p159 = scmp.ne.s32.totalorder %s151, %s154
      %p160 = scmp.eq.s32.totalorder %s23, 0
      %p161 = por %p159, %p160
      %p162 = scmp.ne.s32.totalorder %s151, %s154
      %p163 = scmp.eq.s32.totalorder %s28, 3
      %p164 = por %p162, %p163
      %p165 = scmp.ne.s32.totalorder %s154, %s155
      %p166 = scmp.eq.s32.totalorder %s28, 0
      %p167 = por %p165, %p166
      %p168 = scmp.ne.s32.totalorder %s154, %s155
      %p169 = scmp.eq.s32.totalorder %s29, 3
      %p170 = por %p168, %p169
      %p172 = scmp.ne.s32.totalorder %s155, %s171
      %p173 = scmp.eq.s32.totalorder %s29, 0
      %p174 = por %p172, %p173
      %p175 = scmp.le.s32.totalorder 1, %s23
      %p176 = scmp.lt.s32.totalorder %s23, 5
      %p177 = pnand %p175, %p176
      %p178 = pneg %p177
      // Predicated region
      $region9: #{tpu_custom_call.1} parent=5 // pred_check
        _
      $region10: #{tpu_custom_call.1} parent=5 // pred_check_branch
        %180 = sbr.rel (%p177) target = $region12
      $region11: #{tpu_custom_call.1} parent=5 // pred_region
        %s181 = ssub.s32 %s23, 1
      $region12: #{tpu_custom_call.1} parent=5 // pred_fallthru
        _
      %p182 = scmp.lt.s32.totalorder %s23, 4
      // Predicated region
      $region13: #{tpu_custom_call.1} parent=5 // pred_check
        %p183 = pneg %p182
      $region14: #{tpu_custom_call.1} parent=5 // pred_check_branch
        %185 = sbr.rel (%p183) target = $region16
      $region15: #{tpu_custom_call.1} parent=5 // pred_region
        // Predicated region
        $region17: #{tpu_custom_call.1} parent=15 // pred_check
          %p186 = pneg %p55
        $region18: #{tpu_custom_call.1} parent=15 // pred_check_branch
          %188 = sbr.rel (%p186) target = $region20
        $region19: #{tpu_custom_call.1} parent=15 // pred_region
          %p189 = scmp.lt.s32.totalorder %s31, 1
          %s190 = scalar_select %p189, %s31, 1
          %s191 = smul.addr %s190, 8
          %s192 = scalar_lea.vmem %s1, %s191
        $region20: #{tpu_custom_call.1} parent=15 // pred_fallthru
          _
        // Predicated region
        $region21: #{tpu_custom_call.1} parent=15 // pred_check
          %p193 = pneg %p81
        $region22: #{tpu_custom_call.1} parent=15 // pred_check_branch
          %195 = sbr.rel (%p193) target = $region24
        $region23: #{tpu_custom_call.1} parent=15 // pred_region
          %s196 = sand.u32 %s71, 1
          %s197 = scalar_lea.sflag [#allocation5], %s196
          %s198 = sand.u32 %s71, 1
          %s199 = smul.addr %s198, 192
          %s200 = scalar_lea.vmem [#allocation4], %s199
          %s202 = ssub.s32 3072, 3072
          %203 = vsyncadd %s197, %s202
          %s204 = smul.addr %s30, 128
          %s205 = scalar_lea.hbm %s2, %s204
          %s206 = sshll.u32 %s200, 4
          %s207 = int_to_ptr.vmem [resolvable:$true] %s206
          %212 = dma.hbm_to_vmem [thread:$0]  %s205, 3072, %s207, %s197, 256, 128, 8
        $region24: #{tpu_custom_call.1} parent=15 // pred_fallthru
          _
        // Predicated region
        $region25: #{tpu_custom_call.1} parent=15 // pred_check
          %p213 = pneg %p107
        $region26: #{tpu_custom_call.1} parent=15 // pred_check_branch
          %215 = sbr.rel (%p213) target = $region28
        $region27: #{tpu_custom_call.1} parent=15 // pred_region
          %p216 = scmp.lt.s32.totalorder %s30, 1
          %s217 = scalar_select %p216, %s30, 1
          %s218 = scalar_lea.vmem %s3, %s217
        $region28: #{tpu_custom_call.1} parent=15 // pred_fallthru
          _
        // Predicated region
        $region29: #{tpu_custom_call.1} parent=15 // pred_check
          %p219 = pneg %p133
        $region30: #{tpu_custom_call.1} parent=15 // pred_check_branch
          %221 = sbr.rel (%p219) target = $region32
        $region31: #{tpu_custom_call.1} parent=15 // pred_region
          %p222 = scmp.lt.s32.totalorder %s31, 1
          %s223 = scalar_select %p222, %s31, 1
          %s224 = smul.addr %s223, 8
          %s225 = scalar_lea.vmem %s4, %s224
        $region32: #{tpu_custom_call.1} parent=15 // pred_fallthru
          _
      $region16: #{tpu_custom_call.1} parent=5 // pred_fallthru
        _
      %p226 = scmp.le.s32.totalorder 1, %s23
      %p227 = scmp.lt.s32.totalorder %s23, 5
      %p228 = pnand %p226, %p227
      %p229 = pneg %p228
      // Predicated region
      $region33: #{tpu_custom_call.1} parent=5 // pred_check
        _
      $region34: #{tpu_custom_call.1} parent=5 // pred_check_branch
        %231 = sbr.rel (%p228) target = $region36
      $region35: #{tpu_custom_call.1} parent=5 // pred_region
        %s232 = ssub.s32 %s23, 1
        %s233 = sand.u32 %s74, 1
        %s234 = scalar_lea.sflag [#allocation5], %s233
        %s235 = sand.u32 %s74, 1
        %s236 = smul.addr %s235, 192
        %s237 = scalar_lea.vmem [#allocation4], %s236
        // Predicated region
        $region37: #{tpu_custom_call.1} parent=35 // pred_check
          %p238 = pneg %p87
        $region38: #{tpu_custom_call.1} parent=35 // pred_check_branch
          %240 = sbr.rel (%p238) target = $region40
        $region39: #{tpu_custom_call.1} parent=35 // pred_region
          %241 = dma.done %s234, 3072
        $region40: #{tpu_custom_call.1} parent=35 // pred_fallthru
          _
        %p242 = scmp.lt.s32.totalorder %s33, 1
        %s243 = scalar_select %p242, %s33, 1
        %s244 = smul.addr %s243, 8
        %s245 = scalar_lea.vmem %s1, %s244
        %p246 = pneg %p61
        %p247 = pneg %p58
        %s248 = sand.u32 %s74, 1
        %s249 = scalar_lea.sflag [#allocation5], %s248
        %s250 = sand.u32 %s74, 1
        %s251 = smul.addr %s250, 192
        %s252 = scalar_lea.vmem [#allocation4], %s251
        %p253 = pneg %p87
        %p254 = pneg %p84
        %p255 = scmp.lt.s32.totalorder %s32, 1
        %s256 = scalar_select %p255, %s32, 1
        %s257 = scalar_lea.vmem %s3, %s256
        %p258 = pneg %p113
        %p259 = pneg %p110
        %p260 = scmp.lt.s32.totalorder %s33, 1
        %s261 = scalar_select %p260, %s33, 1
        %s262 = smul.addr %s261, 8
        %s263 = scalar_lea.vmem %s4, %s262
        %p264 = pneg %p139
        %p265 = pneg %p136
        %p266 = pneg %p167
        %p267 = pneg %p164
        %s268 = sand.u32 %s154, 1
        %s269 = scalar_lea.sflag [#allocation6], %s268
        %s270 = sand.u32 %s154, 1
        %s271 = smul.addr %s270, 8
        %s272 = scalar_lea.vmem [#allocation7], %s271
        %p273 = scmp.lt.s32.totalorder %s33, 1
        %s274 = scalar_select %p273, %s33, 1
        %s275 = smul.addr %s274, 8
        %s276 = scalar_lea.vmem %s1, %s275
        %p277 = scmp.lt.s32.totalorder %s32, 1
        %s278 = scalar_select %p277, %s32, 1
        %s279 = scalar_lea.vmem %s3, %s278
        %p280 = scmp.lt.s32.totalorder %s33, 1
        %s281 = scalar_select %p280, %s33, 1
        %s282 = smul.addr %s281, 8
        %s283 = scalar_lea.vmem %s4, %s282
        %v284 = vld [vmem:[%s276] sm:$0xff]
        %v285 = vld [vmem:[%s283] sm:$0xff]
        %s286 = smul.u32 %s32, 2
        %s287 = sadd.s32 %s286, %s33
        %s288 = sld [smem:[#allocation3 + %s287]]
        %p289 = scmp.ne.s32.totalorder %s288, 0
        // Predicated region
        $region41: #{tpu_custom_call.1} parent=35 // pred_check
          %p290 = pneg %p289
        $region42: #{tpu_custom_call.1} parent=35 // pred_check_branch
          %292 = sbr.rel (%p290) target = $region44
        $region43: #{tpu_custom_call.1} parent=35 // pred_region
          %s293 = smul.u32 %s32, 128
          %v294 = vlaneseq
          %v295 = vand.u32 %v294, 127
          %v296 = vstv %s293
          %v297 = vadd.s32 %v296, %v295
          %298 = vset.pattern.permute.xlu0 0
          %299 = vperm.xlu0 %298, %v285
          %v300 = vpop.permute.xlu0 %299
          %vm301 = vcmp.eq.s32.totalorder %v297, %v300
          %v302 = vld [vmem:[%s237] sm:$0xff]
          %v303 = vld [vmem:[%s237 + $0x8] sm:$0xff]
          %v304 = vld [vmem:[%s237 + $0x10] sm:$0xff]
          %v305 = vld [vmem:[%s237 + $0x18] sm:$0xff]
          %v306 = vld [vmem:[%s237 + $0x20] sm:$0xff]
          %v307 = vld [vmem:[%s237 + $0x28] sm:$0xff]
          %v308 = vld [vmem:[%s237 + $0x30] sm:$0xff]
          %v309 = vld [vmem:[%s237 + $0x38] sm:$0xff]
          %vm310 = vcmask 523264
          %v312 = vsel %vm310, %v284, 0
          %314 = vmatprep.subr.mxu0 0.0
          %315 = vmatpush1.msra.mxu0 %v302
          %316 = vmatprep.subr.mxu0 0.0
          %317 = vmatpush1.msra.mxu0 %v303
          %318 = vmatprep.subr.mxu0 0.0
          %319 = vmatpush1.msra.mxu0 %v304
          %320 = vmatprep.subr.mxu0 0.0
          %321 = vmatpush1.msra.mxu0 %v305
          %322 = vmatprep.subr.mxu0 0.0
          %323 = vmatpush1.msra.mxu0 %v306
          %324 = vmatprep.subr.mxu0 0.0
          %325 = vmatpush1.msra.mxu0 %v307
          %326 = vmatprep.subr.mxu0 0.0
          %327 = vmatpush1.msra.mxu0 %v308
          %328 = vmatprep.subr.mxu0 0.0
          %329 = vmatpush1.msra.mxu0 %v309
          %330 = vmatprep.subr.mxu0 0.0
          %331 = vmatpush1.msra.mxu0 0.0
          %332 = vmatprep.subr.mxu0 0.0
          %333 = vmatpush1.msra.mxu0 0.0
          %334 = vmatprep.subr.mxu0 0.0
          %335 = vmatpush1.msra.mxu0 0.0
          %336 = vmatprep.subr.mxu0 0.0
          %337 = vmatpush1.msra.mxu0 0.0
          %338 = vmatprep.subr.mxu0 0.0
          %339 = vmatpush1.msra.mxu0 0.0
          %340 = vmatprep.subr.mxu0 0.0
          %341 = vmatpush1.msra.mxu0 0.0
          %342 = vmatprep.subr.mxu0 0.0
          %343 = vmatpush1.msra.mxu0 0.0
          %344 = vmatprep.subr.mxu0 0.0
          %345 = vmatpush1.msra.mxu0 0.0
          %346 = vmatprep.subr.mxu0 0.0
          %347 = vmatpush1.msra.mxu0 0.0
          %348 = vmatprep.subr.mxu0 0.0
          %349 = vmatpush1.msra.mxu0 0.0
          %350 = vmatprep.subr.mxu0 0.0
          %351 = vmatpush1.msra.mxu0 0.0
          %352 = vmatprep.subr.mxu0 0.0
          %353 = vmatpush1.msra.mxu0 0.0
          %354 = vmatprep.subr.mxu0 0.0
          %355 = vmatpush1.msra.mxu0 0.0
          %356 = vmatprep.subr.mxu0 0.0
          %357 = vmatpush1.msra.mxu0 0.0
          %358 = vmatprep.subr.mxu0 0.0
          %359 = vmatpush1.msra.mxu0 0.0
          %360 = vmatprep.subr.mxu0 0.0
          %361 = vmatpush1.msra.mxu0 0.0
          %362 = vmatprep.subr.mxu0 0.0
          %363 = vmatpush1.msra.mxu0 0.0
          %364 = vmatprep.subr.mxu0 0.0
          %365 = vmatpush1.msra.mxu0 0.0
          %366 = vmatprep.subr.mxu0 0.0
          %367 = vmatpush1.msra.mxu0 0.0
          %368 = vmatprep.subr.mxu0 0.0
          %369 = vmatpush1.msra.mxu0 0.0
          %370 = vmatprep.subr.mxu0 0.0
          %371 = vmatpush1.msra.mxu0 0.0
          %372 = vmatprep.subr.mxu0 0.0
          %373 = vmatpush1.msra.mxu0 0.0
          %374 = vmatprep.subr.mxu0 0.0
          %375 = vmatpush1.msra.mxu0 0.0
          %376 = vmatprep.subr.mxu0 0.0
          %377 = vmatpush1.msra.mxu0 0.0
          %378 = vmatprep.mubr.f32.mxu0 0.0
          %379 = vmatmul.mubr.f32.gmra.mrb[0].mxu0 %v312
          %v380 = vpop.f32.mrb[0].mxu0
          %v381 = vadd.f32 0.0, %v380
          %v382 = vpop.f32.mrb[0].mxu0
          %383 = vdwg.mxu0
          %v384 = vsel %vm301, %v381, 0.0
          %385 = vadd.xlane.f32.xlu0 %v384
          %v386 = vpop.xlane.xlu0 %385
          %s387 = scalar_lea.vmem %s237, 64 [#allocation4]
          %v388 = vld [vmem:[%s387] sm:$0xff]
          %v389 = vld [vmem:[%s387 + $0x8] sm:$0xff]
          %v390 = vld [vmem:[%s387 + $0x10] sm:$0xff]
          %v391 = vld [vmem:[%s387 + $0x18] sm:$0xff]
          %v392 = vld [vmem:[%s387 + $0x20] sm:$0xff]
          %v393 = vld [vmem:[%s387 + $0x28] sm:$0xff]
          %v394 = vld [vmem:[%s387 + $0x30] sm:$0xff]
          %v395 = vld [vmem:[%s387 + $0x38] sm:$0xff]
          %396 = vmatprep.subr.mxu0 0.0
          %397 = vmatpush1.msra.mxu0 %v388
          %398 = vmatprep.subr.mxu0 0.0
          %399 = vmatpush1.msra.mxu0 %v389
          %400 = vmatprep.subr.mxu0 0.0
          %401 = vmatpush1.msra.mxu0 %v390
          %402 = vmatprep.subr.mxu0 0.0
          %403 = vmatpush1.msra.mxu0 %v391
          %404 = vmatprep.subr.mxu0 0.0
          %405 = vmatpush1.msra.mxu0 %v392
          %406 = vmatprep.subr.mxu0 0.0
          %407 = vmatpush1.msra.mxu0 %v393
          %408 = vmatprep.subr.mxu0 0.0
          %409 = vmatpush1.msra.mxu0 %v394
          %410 = vmatprep.subr.mxu0 0.0
          %411 = vmatpush1.msra.mxu0 %v395
          %412 = vmatprep.subr.mxu0 0.0
          %413 = vmatpush1.msra.mxu0 0.0
          %414 = vmatprep.subr.mxu0 0.0
          %415 = vmatpush1.msra.mxu0 0.0
          %416 = vmatprep.subr.mxu0 0.0
          %417 = vmatpush1.msra.mxu0 0.0
          %418 = vmatprep.subr.mxu0 0.0
          %419 = vmatpush1.msra.mxu0 0.0
          %420 = vmatprep.subr.mxu0 0.0
          %421 = vmatpush1.msra.mxu0 0.0
          %422 = vmatprep.subr.mxu0 0.0
          %423 = vmatpush1.msra.mxu0 0.0
          %424 = vmatprep.subr.mxu0 0.0
          %425 = vmatpush1.msra.mxu0 0.0
          %426 = vmatprep.subr.mxu0 0.0
          %427 = vmatpush1.msra.mxu0 0.0
          %428 = vmatprep.subr.mxu0 0.0
          %429 = vmatpush1.msra.mxu0 0.0
          %430 = vmatprep.subr.mxu0 0.0
          %431 = vmatpush1.msra.mxu0 0.0
          %432 = vmatprep.subr.mxu0 0.0
          %433 = vmatpush1.msra.mxu0 0.0
          %434 = vmatprep.subr.mxu0 0.0
          %435 = vmatpush1.msra.mxu0 0.0
          %436 = vmatprep.subr.mxu0 0.0
          %437 = vmatpush1.msra.mxu0 0.0
          %438 = vmatprep.subr.mxu0 0.0
          %439 = vmatpush1.msra.mxu0 0.0
          %440 = vmatprep.subr.mxu0 0.0
          %441 = vmatpush1.msra.mxu0 0.0
          %442 = vmatprep.subr.mxu0 0.0
          %443 = vmatpush1.msra.mxu0 0.0
          %444 = vmatprep.subr.mxu0 0.0
          %445 = vmatpush1.msra.mxu0 0.0
          %446 = vmatprep.subr.mxu0 0.0
          %447 = vmatpush1.msra.mxu0 0.0
          %448 = vmatprep.subr.mxu0 0.0
          %449 = vmatpush1.msra.mxu0 0.0
          %450 = vmatprep.subr.mxu0 0.0
          %451 = vmatpush1.msra.mxu0 0.0
          %452 = vmatprep.subr.mxu0 0.0
          %453 = vmatpush1.msra.mxu0 0.0
          %454 = vmatprep.subr.mxu0 0.0
          %455 = vmatpush1.msra.mxu0 0.0
          %456 = vmatprep.subr.mxu0 0.0
          %457 = vmatpush1.msra.mxu0 0.0
          %458 = vmatprep.subr.mxu0 0.0
          %459 = vmatpush1.msra.mxu0 0.0
          %460 = vmatprep.mubr.f32.mxu0 0.0
          %461 = vmatmul.mubr.f32.gmra.mrb[0].mxu0 %v312
          %v462 = vpop.f32.mrb[0].mxu0
          %v463 = vadd.f32 0.0, %v462
          %v464 = vpop.f32.mrb[0].mxu0
          %465 = vdwg.mxu0
          %v466 = vmax.f32 %v381, %v463
          %v467 = vsel %vm301, %v463, 0.0
          %468 = vadd.xlane.f32.xlu0 %v467
          %v469 = vpop.xlane.xlu0 %468
          %v470 = vsub.f32 %v386, %v469
          %v471 = vand.u32 2147483647, %v470
          %v472 = vadd.f32 %v471, 0.0
          %s473 = scalar_lea.vmem %s237, 128 [#allocation4]
          %v474 = vld [vmem:[%s473] sm:$0xff]
          %v475 = vld [vmem:[%s473 + $0x8] sm:$0xff]
          %v476 = vld [vmem:[%s473 + $0x10] sm:$0xff]
          %v477 = vld [vmem:[%s473 + $0x18] sm:$0xff]
          %v478 = vld [vmem:[%s473 + $0x20] sm:$0xff]
          %v479 = vld [vmem:[%s473 + $0x28] sm:$0xff]
          %v480 = vld [vmem:[%s473 + $0x30] sm:$0xff]
          %v481 = vld [vmem:[%s473 + $0x38] sm:$0xff]
          %482 = vmatprep.subr.mxu0 0.0
          %483 = vmatpush1.msra.mxu0 %v474
          %484 = vmatprep.subr.mxu0 0.0
          %485 = vmatpush1.msra.mxu0 %v475
          %486 = vmatprep.subr.mxu0 0.0
          %487 = vmatpush1.msra.mxu0 %v476
          %488 = vmatprep.subr.mxu0 0.0
          %489 = vmatpush1.msra.mxu0 %v477
          %490 = vmatprep.subr.mxu0 0.0
          %491 = vmatpush1.msra.mxu0 %v478
          %492 = vmatprep.subr.mxu0 0.0
          %493 = vmatpush1.msra.mxu0 %v479
          %494 = vmatprep.subr.mxu0 0.0
          %495 = vmatpush1.msra.mxu0 %v480
          %496 = vmatprep.subr.mxu0 0.0
          %497 = vmatpush1.msra.mxu0 %v481
          %498 = vmatprep.subr.mxu0 0.0
          %499 = vmatpush1.msra.mxu0 0.0
          %500 = vmatprep.subr.mxu0 0.0
          %501 = vmatpush1.msra.mxu0 0.0
          %502 = vmatprep.subr.mxu0 0.0
          %503 = vmatpush1.msra.mxu0 0.0
          %504 = vmatprep.subr.mxu0 0.0
          %505 = vmatpush1.msra.mxu0 0.0
          %506 = vmatprep.subr.mxu0 0.0
          %507 = vmatpush1.msra.mxu0 0.0
          %508 = vmatprep.subr.mxu0 0.0
          %509 = vmatpush1.msra.mxu0 0.0
          %510 = vmatprep.subr.mxu0 0.0
          %511 = vmatpush1.msra.mxu0 0.0
          %512 = vmatprep.subr.mxu0 0.0
          %513 = vmatpush1.msra.mxu0 0.0
          %514 = vmatprep.subr.mxu0 0.0
          %515 = vmatpush1.msra.mxu0 0.0
          %516 = vmatprep.subr.mxu0 0.0
          %517 = vmatpush1.msra.mxu0 0.0
          %518 = vmatprep.subr.mxu0 0.0
          %519 = vmatpush1.msra.mxu0 0.0
          %520 = vmatprep.subr.mxu0 0.0
          %521 = vmatpush1.msra.mxu0 0.0
          %522 = vmatprep.subr.mxu0 0.0
          %523 = vmatpush1.msra.mxu0 0.0
          %524 = vmatprep.subr.mxu0 0.0
          %525 = vmatpush1.msra.mxu0 0.0
          %526 = vmatprep.subr.mxu0 0.0
          %527 = vmatpush1.msra.mxu0 0.0
          %528 = vmatprep.subr.mxu0 0.0
          %529 = vmatpush1.msra.mxu0 0.0
          %530 = vmatprep.subr.mxu0 0.0
          %531 = vmatpush1.msra.mxu0 0.0
          %532 = vmatprep.subr.mxu0 0.0
          %533 = vmatpush1.msra.mxu0 0.0
          %534 = vmatprep.subr.mxu0 0.0
          %535 = vmatpush1.msra.mxu0 0.0
          %536 = vmatprep.subr.mxu0 0.0
          %537 = vmatpush1.msra.mxu0 0.0
          %538 = vmatprep.subr.mxu0 0.0
          %539 = vmatpush1.msra.mxu0 0.0
          %540 = vmatprep.subr.mxu0 0.0
          %541 = vmatpush1.msra.mxu0 0.0
          %542 = vmatprep.subr.mxu0 0.0
          %543 = vmatpush1.msra.mxu0 0.0
          %544 = vmatprep.subr.mxu0 0.0
          %545 = vmatpush1.msra.mxu0 0.0
          %546 = vmatprep.mubr.f32.mxu0 0.0
          %547 = vmatmul.mubr.f32.gmra.mrb[0].mxu0 %v312
          %v548 = vpop.f32.mrb[0].mxu0
          %v549 = vadd.f32 0.0, %v548
          %v550 = vpop.f32.mrb[0].mxu0
          %551 = vdwg.mxu0
          %v552 = vmax.f32 %v466, %v549
          %v553 = vsel %vm301, %v549, 0.0
          %554 = vadd.xlane.f32.xlu0 %v553
          %v555 = vpop.xlane.xlu0 %554
          %v556 = vsub.f32 %v386, %v555
          %v557 = vand.u32 2147483647, %v556
          %v558 = vadd.f32 %v472, %v557
          %v559 = vmul.f32 %v558, 0.5
          %v560 = vsel %vm301, %v552, 0.0
          %561 = vadd.xlane.f32.xlu0 %v560
          %v562 = vpop.xlane.xlu0 %561
          %v563 = vld [vmem:[%s279] sm:$0x1]
          %v565 = vlaneseq
          %v566 = vshrl.u32 %v565, 7
          %v567 = vsub.s32 0, %v566
          %v568 = vrot.slane %v563, %v567
          %v570 = vsel %vm301, %v568, 0.0
          %571 = vadd.xlane.f32.xlu0 %v570
          %v572 = vpop.xlane.xlu0 %571
          %v573 = vadd.f32 %v559, 1.0
          %v574 = vmul.f32 %v572, %v573
          %v575 = vsub.f32 %v562, %v574
          %v576 = vsel %vm301, %v575, %v552
          %v577 = vmul.f32 %v576, 64.0
          %578 = vst [vmem:[%s272] sm:$0xff] %v577
        $region44: #{tpu_custom_call.1} parent=35 // pred_fallthru
          _
        %p579 = scmp.eq.s32.totalorder %s288, 0
        // Predicated region
        $region45: #{tpu_custom_call.1} parent=35 // pred_check
          %p580 = pneg %p579
        $region46: #{tpu_custom_call.1} parent=35 // pred_check_branch
          %582 = sbr.rel (%p580) target = $region48
        $region47: #{tpu_custom_call.1} parent=35 // pred_region
          %v583 = vld [vmem:[%s237] sm:$0xff]
          %v584 = vld [vmem:[%s237 + $0x8] sm:$0xff]
          %v585 = vld [vmem:[%s237 + $0x10] sm:$0xff]
          %v586 = vld [vmem:[%s237 + $0x18] sm:$0xff]
          %v587 = vld [vmem:[%s237 + $0x20] sm:$0xff]
          %v588 = vld [vmem:[%s237 + $0x28] sm:$0xff]
          %v589 = vld [vmem:[%s237 + $0x30] sm:$0xff]
          %v590 = vld [vmem:[%s237 + $0x38] sm:$0xff]
          %vm591 = vcmask 523264
          %v593 = vsel %vm591, %v284, 0
          %595 = vmatprep.subr.mxu0 0.0
          %596 = vmatpush1.msra.mxu0 %v583
          %597 = vmatprep.subr.mxu0 0.0
          %598 = vmatpush1.msra.mxu0 %v584
          %599 = vmatprep.subr.mxu0 0.0
          %600 = vmatpush1.msra.mxu0 %v585
          %601 = vmatprep.subr.mxu0 0.0
          %602 = vmatpush1.msra.mxu0 %v586
          %603 = vmatprep.subr.mxu0 0.0
          %604 = vmatpush1.msra.mxu0 %v587
          %605 = vmatprep.subr.mxu0 0.0
          %606 = vmatpush1.msra.mxu0 %v588
          %607 = vmatprep.subr.mxu0 0.0
          %608 = vmatpush1.msra.mxu0 %v589
          %609 = vmatprep.subr.mxu0 0.0
          %610 = vmatpush1.msra.mxu0 %v590
          %611 = vmatprep.subr.mxu0 0.0
          %612 = vmatpush1.msra.mxu0 0.0
          %613 = vmatprep.subr.mxu0 0.0
          %614 = vmatpush1.msra.mxu0 0.0
          %615 = vmatprep.subr.mxu0 0.0
          %616 = vmatpush1.msra.mxu0 0.0
          %617 = vmatprep.subr.mxu0 0.0
          %618 = vmatpush1.msra.mxu0 0.0
          %619 = vmatprep.subr.mxu0 0.0
          %620 = vmatpush1.msra.mxu0 0.0
          %621 = vmatprep.subr.mxu0 0.0
          %622 = vmatpush1.msra.mxu0 0.0
          %623 = vmatprep.subr.mxu0 0.0
          %624 = vmatpush1.msra.mxu0 0.0
          %625 = vmatprep.subr.mxu0 0.0
          %626 = vmatpush1.msra.mxu0 0.0
          %627 = vmatprep.subr.mxu0 0.0
          %628 = vmatpush1.msra.mxu0 0.0
          %629 = vmatprep.subr.mxu0 0.0
          %630 = vmatpush1.msra.mxu0 0.0
          %631 = vmatprep.subr.mxu0 0.0
          %632 = vmatpush1.msra.mxu0 0.0
          %633 = vmatprep.subr.mxu0 0.0
          %634 = vmatpush1.msra.mxu0 0.0
          %635 = vmatprep.subr.mxu0 0.0
          %636 = vmatpush1.msra.mxu0 0.0
          %637 = vmatprep.subr.mxu0 0.0
          %638 = vmatpush1.msra.mxu0 0.0
          %639 = vmatprep.subr.mxu0 0.0
          %640 = vmatpush1.msra.mxu0 0.0
          %641 = vmatprep.subr.mxu0 0.0
          %642 = vmatpush1.msra.mxu0 0.0
          %643 = vmatprep.subr.mxu0 0.0
          %644 = vmatpush1.msra.mxu0 0.0
          %645 = vmatprep.subr.mxu0 0.0
          %646 = vmatpush1.msra.mxu0 0.0
          %647 = vmatprep.subr.mxu0 0.0
          %648 = vmatpush1.msra.mxu0 0.0
          %649 = vmatprep.subr.mxu0 0.0
          %650 = vmatpush1.msra.mxu0 0.0
          %651 = vmatprep.subr.mxu0 0.0
          %652 = vmatpush1.msra.mxu0 0.0
          %653 = vmatprep.subr.mxu0 0.0
          %654 = vmatpush1.msra.mxu0 0.0
          %655 = vmatprep.subr.mxu0 0.0
          %656 = vmatpush1.msra.mxu0 0.0
          %657 = vmatprep.subr.mxu0 0.0
          %658 = vmatpush1.msra.mxu0 0.0
          %659 = vmatprep.mubr.f32.mxu0 0.0
          %660 = vmatmul.mubr.f32.gmra.mrb[0].mxu0 %v593
          %v661 = vpop.f32.mrb[0].mxu0
          %v662 = vadd.f32 0.0, %v661
          %v663 = vpop.f32.mrb[0].mxu0
          %664 = vdwg.mxu0
          %s665 = scalar_lea.vmem %s237, 64 [#allocation4]
          %v666 = vld [vmem:[%s665] sm:$0xff]
          %v667 = vld [vmem:[%s665 + $0x8] sm:$0xff]
          %v668 = vld [vmem:[%s665 + $0x10] sm:$0xff]
          %v669 = vld [vmem:[%s665 + $0x18] sm:$0xff]
          %v670 = vld [vmem:[%s665 + $0x20] sm:$0xff]
          %v671 = vld [vmem:[%s665 + $0x28] sm:$0xff]
          %v672 = vld [vmem:[%s665 + $0x30] sm:$0xff]
          %v673 = vld [vmem:[%s665 + $0x38] sm:$0xff]
          %674 = vmatprep.subr.mxu0 0.0
          %675 = vmatpush1.msra.mxu0 %v666
          %676 = vmatprep.subr.mxu0 0.0
          %677 = vmatpush1.msra.mxu0 %v667
          %678 = vmatprep.subr.mxu0 0.0
          %679 = vmatpush1.msra.mxu0 %v668
          %680 = vmatprep.subr.mxu0 0.0
          %681 = vmatpush1.msra.mxu0 %v669
          %682 = vmatprep.subr.mxu0 0.0
          %683 = vmatpush1.msra.mxu0 %v670
          %684 = vmatprep.subr.mxu0 0.0
          %685 = vmatpush1.msra.mxu0 %v671
          %686 = vmatprep.subr.mxu0 0.0
          %687 = vmatpush1.msra.mxu0 %v672
          %688 = vmatprep.subr.mxu0 0.0
          %689 = vmatpush1.msra.mxu0 %v673
          %690 = vmatprep.subr.mxu0 0.0
          %691 = vmatpush1.msra.mxu0 0.0
          %692 = vmatprep.subr.mxu0 0.0
          %693 = vmatpush1.msra.mxu0 0.0
          %694 = vmatprep.subr.mxu0 0.0
          %695 = vmatpush1.msra.mxu0 0.0
          %696 = vmatprep.subr.mxu0 0.0
          %697 = vmatpush1.msra.mxu0 0.0
          %698 = vmatprep.subr.mxu0 0.0
          %699 = vmatpush1.msra.mxu0 0.0
          %700 = vmatprep.subr.mxu0 0.0
          %701 = vmatpush1.msra.mxu0 0.0
          %702 = vmatprep.subr.mxu0 0.0
          %703 = vmatpush1.msra.mxu0 0.0
          %704 = vmatprep.subr.mxu0 0.0
          %705 = vmatpush1.msra.mxu0 0.0
          %706 = vmatprep.subr.mxu0 0.0
          %707 = vmatpush1.msra.mxu0 0.0
          %708 = vmatprep.subr.mxu0 0.0
          %709 = vmatpush1.msra.mxu0 0.0
          %710 = vmatprep.subr.mxu0 0.0
          %711 = vmatpush1.msra.mxu0 0.0
          %712 = vmatprep.subr.mxu0 0.0
          %713 = vmatpush1.msra.mxu0 0.0
          %714 = vmatprep.subr.mxu0 0.0
          %715 = vmatpush1.msra.mxu0 0.0
          %716 = vmatprep.subr.mxu0 0.0
          %717 = vmatpush1.msra.mxu0 0.0
          %718 = vmatprep.subr.mxu0 0.0
          %719 = vmatpush1.msra.mxu0 0.0
          %720 = vmatprep.subr.mxu0 0.0
          %721 = vmatpush1.msra.mxu0 0.0
          %722 = vmatprep.subr.mxu0 0.0
          %723 = vmatpush1.msra.mxu0 0.0
          %724 = vmatprep.subr.mxu0 0.0
          %725 = vmatpush1.msra.mxu0 0.0
          %726 = vmatprep.subr.mxu0 0.0
          %727 = vmatpush1.msra.mxu0 0.0
          %728 = vmatprep.subr.mxu0 0.0
          %729 = vmatpush1.msra.mxu0 0.0
          %730 = vmatprep.subr.mxu0 0.0
          %731 = vmatpush1.msra.mxu0 0.0
          %732 = vmatprep.subr.mxu0 0.0
          %733 = vmatpush1.msra.mxu0 0.0
          %734 = vmatprep.subr.mxu0 0.0
          %735 = vmatpush1.msra.mxu0 0.0
          %736 = vmatprep.subr.mxu0 0.0
          %737 = vmatpush1.msra.mxu0 0.0
          %738 = vmatprep.mubr.f32.mxu0 0.0
          %739 = vmatmul.mubr.f32.gmra.mrb[0].mxu0 %v593
          %v740 = vpop.f32.mrb[0].mxu0
          %v741 = vadd.f32 0.0, %v740
          %v742 = vpop.f32.mrb[0].mxu0
          %743 = vdwg.mxu0
          %v744 = vmax.f32 %v662, %v741
          %s745 = scalar_lea.vmem %s237, 128 [#allocation4]
          %v746 = vld [vmem:[%s745] sm:$0xff]
          %v747 = vld [vmem:[%s745 + $0x8] sm:$0xff]
          %v748 = vld [vmem:[%s745 + $0x10] sm:$0xff]
          %v749 = vld [vmem:[%s745 + $0x18] sm:$0xff]
          %v750 = vld [vmem:[%s745 + $0x20] sm:$0xff]
          %v751 = vld [vmem:[%s745 + $0x28] sm:$0xff]
          %v752 = vld [vmem:[%s745 + $0x30] sm:$0xff]
          %v753 = vld [vmem:[%s745 + $0x38] sm:$0xff]
          %754 = vmatprep.subr.mxu0 0.0
          %755 = vmatpush1.msra.mxu0 %v746
          %756 = vmatprep.subr.mxu0 0.0
          %757 = vmatpush1.msra.mxu0 %v747
          %758 = vmatprep.subr.mxu0 0.0
          %759 = vmatpush1.msra.mxu0 %v748
          %760 = vmatprep.subr.mxu0 0.0
          %761 = vmatpush1.msra.mxu0 %v749
          %762 = vmatprep.subr.mxu0 0.0
          %763 = vmatpush1.msra.mxu0 %v750
          %764 = vmatprep.subr.mxu0 0.0
          %765 = vmatpush1.msra.mxu0 %v751
          %766 = vmatprep.subr.mxu0 0.0
          %767 = vmatpush1.msra.mxu0 %v752
          %768 = vmatprep.subr.mxu0 0.0
          %769 = vmatpush1.msra.mxu0 %v753
          %770 = vmatprep.subr.mxu0 0.0
          %771 = vmatpush1.msra.mxu0 0.0
          %772 = vmatprep.subr.mxu0 0.0
          %773 = vmatpush1.msra.mxu0 0.0
          %774 = vmatprep.subr.mxu0 0.0
          %775 = vmatpush1.msra.mxu0 0.0
          %776 = vmatprep.subr.mxu0 0.0
          %777 = vmatpush1.msra.mxu0 0.0
          %778 = vmatprep.subr.mxu0 0.0
          %779 = vmatpush1.msra.mxu0 0.0
          %780 = vmatprep.subr.mxu0 0.0
          %781 = vmatpush1.msra.mxu0 0.0
          %782 = vmatprep.subr.mxu0 0.0
          %783 = vmatpush1.msra.mxu0 0.0
          %784 = vmatprep.subr.mxu0 0.0
          %785 = vmatpush1.msra.mxu0 0.0
          %786 = vmatprep.subr.mxu0 0.0
          %787 = vmatpush1.msra.mxu0 0.0
          %788 = vmatprep.subr.mxu0 0.0
          %789 = vmatpush1.msra.mxu0 0.0
          %790 = vmatprep.subr.mxu0 0.0
          %791 = vmatpush1.msra.mxu0 0.0
          %792 = vmatprep.subr.mxu0 0.0
          %793 = vmatpush1.msra.mxu0 0.0
          %794 = vmatprep.subr.mxu0 0.0
          %795 = vmatpush1.msra.mxu0 0.0
          %796 = vmatprep.subr.mxu0 0.0
          %797 = vmatpush1.msra.mxu0 0.0
          %798 = vmatprep.subr.mxu0 0.0
          %799 = vmatpush1.msra.mxu0 0.0
          %800 = vmatprep.subr.mxu0 0.0
          %801 = vmatpush1.msra.mxu0 0.0
          %802 = vmatprep.subr.mxu0 0.0
          %803 = vmatpush1.msra.mxu0 0.0
          %804 = vmatprep.subr.mxu0 0.0
          %805 = vmatpush1.msra.mxu0 0.0
          %806 = vmatprep.subr.mxu0 0.0
          %807 = vmatpush1.msra.mxu0 0.0
          %808 = vmatprep.subr.mxu0 0.0
          %809 = vmatpush1.msra.mxu0 0.0
          %810 = vmatprep.subr.mxu0 0.0
          %811 = vmatpush1.msra.mxu0 0.0
          %812 = vmatprep.subr.mxu0 0.0
          %813 = vmatpush1.msra.mxu0 0.0
          %814 = vmatprep.subr.mxu0 0.0
          %815 = vmatpush1.msra.mxu0 0.0
          %816 = vmatprep.subr.mxu0 0.0
          %817 = vmatpush1.msra.mxu0 0.0
          %818 = vmatprep.mubr.f32.mxu0 0.0
          %819 = vmatmul.mubr.f32.gmra.mrb[0].mxu0 %v593
          %v820 = vpop.f32.mrb[0].mxu0
          %v821 = vadd.f32 0.0, %v820
          %v822 = vpop.f32.mrb[0].mxu0
          %823 = vdwg.mxu0
          %v824 = vmax.f32 %v744, %v821
          %v825 = vmul.f32 %v824, 64.0
          %826 = vst [vmem:[%s272] sm:$0xff] %v825
        $region48: #{tpu_custom_call.1} parent=35 // pred_fallthru
          _
        %s827 = sand.u32 %s154, 1
        %s828 = scalar_lea.sflag [#allocation6], %s827
        %s829 = sand.u32 %s154, 1
        %s830 = smul.addr %s829, 8
        %s831 = scalar_lea.vmem [#allocation7], %s830
        // Predicated region
        $region49: #{tpu_custom_call.1} parent=35 // pred_check
          %p832 = pneg %p164
        $region50: #{tpu_custom_call.1} parent=35 // pred_check_branch
          %834 = sbr.rel (%p832) target = $region52
        $region51: #{tpu_custom_call.1} parent=35 // pred_region
          %s836 = ssub.s32 128, 128
          %837 = vsyncadd %s828, %s836
          %s838 = smul.addr %s33, 2
          %s839 = sadd.s32 %s32, %s838
          %s840 = smul.addr %s839, 128
          %s841 = scalar_lea.hbm %s5, %s840
          %s843 = sshll.u32 %s831, 4
          %s844 = int_to_ptr.vmem [resolvable:$true] %s843
          %846 = dma.vmem_to_hbm [thread:$0]  %s844, 128, %s841, %s828
        $region52: #{tpu_custom_call.1} parent=35 // pred_fallthru
          _
      $region36: #{tpu_custom_call.1} parent=5 // pred_fallthru
        _
      %p847 = scmp.le.s32.totalorder 2, %s23
      // Predicated region
      $region53: #{tpu_custom_call.1} parent=5 // pred_check
        %p848 = pneg %p847
      $region54: #{tpu_custom_call.1} parent=5 // pred_check_branch
        %850 = sbr.rel (%p848) target = $region56
      $region55: #{tpu_custom_call.1} parent=5 // pred_region
        %s851 = ssub.s32 %s23, 2
        // Predicated region
        $region57: #{tpu_custom_call.1} parent=55 // pred_check
          %p852 = pneg %p170
        $region58: #{tpu_custom_call.1} parent=55 // pred_check_branch
          %854 = sbr.rel (%p852) target = $region60
        $region59: #{tpu_custom_call.1} parent=55 // pred_region
          %s855 = sand.u32 %s155, 1
          %s856 = scalar_lea.sflag [#allocation6], %s855
          %s857 = sand.u32 %s155, 1
          %s858 = smul.addr %s857, 8
          %s859 = scalar_lea.vmem [#allocation7], %s858
          %860 = dma.done %s856, 128
        $region60: #{tpu_custom_call.1} parent=55 // pred_fallthru
          _
      $region56: #{tpu_custom_call.1} parent=5 // pred_fallthru
        _
    $region6: #{tpu_custom_call.1} parent=1 // loop_footer
      %s27 = sadd.s32 1, %s23
    $region7: #{tpu_custom_call.1} parent=1 // loop_footer_branch
      %22 = sbr.rel target = $region3
    $region8: #{tpu_custom_call.1} parent=1 // loop_exit
      _
    %861 = vsyncpa [#allocation5], 1
    %s862 = scalar_lea.sflag [#allocation5], 1
    %863 = vsyncpa %s862, 1
    %864 = vsyncpa [#allocation6], 1
    %s865 = scalar_lea.sflag [#allocation6], 1
    %866 = vsyncpa %s865, 1

</llo_original>
